<compile_context>
chip_gen: v6e
topology: v6e:2x2x1
jax: 0.10.0
libtpu: 0.0.40
codegen_flags: <defaults>
</compile_context>

<pallas_src>
import functools

import jax
import jax.numpy as jnp
from jax.experimental import pallas as pl
from jax.experimental.pallas import tpu as pltpu


# ----------------------------- kernels ---------------------------------------


def gcn_layer1_kernel(a_ref, x_ref, w1_ref, b1_ref, h_ref):
    """H_blk = relu( (A_blk @ X) @ W1 + b1 )   -- contract A against narrow F first."""
    ax = jnp.dot(a_ref[...], x_ref[...], preferred_element_type=jnp.float32)     # [TM, F]
    h = jnp.dot(ax.astype(jnp.bfloat16), w1_ref[...],
                preferred_element_type=jnp.float32)                               # [TM, Hp]
    h = h + b1_ref[...]
    h = jnp.maximum(h, 0.0)
    # TODO(synk): F.dropout(p=0.5, training=True) omitted — eval-mode forward (identity).
    h_ref[...] = h.astype(h_ref.dtype)


def gcn_layer2_kernel(a_ref, h_ref, w2_ref, b2_ref, o_ref, *, num_classes):
    """O_blk = log_softmax( (A_blk @ H) @ W2 + b2 , dim=1 ) over the real classes."""
    ah = jnp.dot(a_ref[...], h_ref[...], preferred_element_type=jnp.float32)      # [TM, Hp]
    logits = jnp.dot(ah.astype(jnp.bfloat16), w2_ref[...],
                     preferred_element_type=jnp.float32)                          # [TM, Cp]
    logits = logits + b2_ref[...]
    # Mask the lane-padded class columns, then numerically-stable log_softmax (dim=1).
    col = jax.lax.broadcasted_iota(jnp.int32, logits.shape, 1)
    logits = jnp.where(col < num_classes, logits, -1e30)
    m = jnp.max(logits, axis=1, keepdims=True)
    z = logits - m
    lse = jnp.log(jnp.sum(jnp.exp(z), axis=1, keepdims=True))
    o_ref[...] = z - lse


# ----------------------------- wrapper ----------------------------------------


def _round_up(v, m):
    return (v + m - 1) // m * m


def gcn_forward(a_hat, x, w1, b1, w2, b2):
    n, f = x.shape
    h = w1.shape[1]
    c = w2.shape[1]

    h_pad = _round_up(h, 128)          # lane-dense hidden width
    c_pad = _round_up(c, 128)          # lane-dense class width
    tm = 128 if n >= 128 else _round_up(n, 8)
    n_pad = _round_up(n, tm)

    # Pad + cast MXU operands to bf16 (fp32 accumulation happens in-kernel).
    a_p = jnp.zeros((n_pad, n_pad), jnp.bfloat16).at[:n, :n].set(a_hat.astype(jnp.bfloat16))
    x_p = jnp.zeros((n_pad, f), jnp.bfloat16).at[:n, :].set(x.astype(jnp.bfloat16))
    w1_p = jnp.zeros((f, h_pad), jnp.bfloat16).at[:, :h].set(w1.astype(jnp.bfloat16))
    b1_p = jnp.zeros((1, h_pad), jnp.float32).at[:, :h].set(b1.reshape(1, h).astype(jnp.float32))
    w2_p = jnp.zeros((h_pad, c_pad), jnp.bfloat16).at[:h, :c].set(w2.astype(jnp.bfloat16))
    b2_p = jnp.zeros((1, c_pad), jnp.float32).at[:, :c].set(b2.reshape(1, c).astype(jnp.float32))

    grid = (n_pad // tm,)
    cparams = pltpu.CompilerParams(
        dimension_semantics=("parallel",),
        vmem_limit_bytes=32 * 1024 * 1024,
    )

    # ---- layer 1: H = relu(A_hat @ X @ W1 + b1), row-tiled over A_hat ----
    h1 = pl.pallas_call(
        gcn_layer1_kernel,
        out_shape=jax.ShapeDtypeStruct((n_pad, h_pad), jnp.bfloat16),
        grid=grid,
        in_specs=[
            pl.BlockSpec((tm, n_pad), lambda i: (i, 0)),     # A row block
            pl.BlockSpec((n_pad, f), lambda i: (0, 0)),      # X (resident)
            pl.BlockSpec((f, h_pad), lambda i: (0, 0)),      # W1
            pl.BlockSpec((1, h_pad), lambda i: (0, 0)),      # b1
        ],
        out_specs=pl.BlockSpec((tm, h_pad), lambda i: (i, 0)),
        compiler_params=cparams,
    )(a_p, x_p, w1_p, b1_p)

    # ---- layer 2 + log_softmax: log_softmax(A_hat @ H @ W2 + b2), row-tiled ----
    out_p = pl.pallas_call(
        functools.partial(gcn_layer2_kernel, num_classes=c),
        out_shape=jax.ShapeDtypeStruct((n_pad, c_pad), jnp.float32),
        grid=grid,
        in_specs=[
            pl.BlockSpec((tm, n_pad), lambda i: (i, 0)),     # A row block
            pl.BlockSpec((n_pad, h_pad), lambda i: (0, 0)),  # H (resident)
            pl.BlockSpec((h_pad, c_pad), lambda i: (0, 0)),  # W2
            pl.BlockSpec((1, c_pad), lambda i: (0, 0)),      # b2
        ],
        out_specs=pl.BlockSpec((tm, c_pad), lambda i: (i, 0)),
        compiler_params=cparams,
    )(a_p, h1, w2_p, b2_p)

    return out_p[:n, :c]


# ----------------------------- graph utils ------------------------------------


def build_normalized_adjacency(edge_index, num_nodes):
    """Dense D^-1/2 (A + I) D^-1/2 from a [2, E] edge_index (PyG gcn_norm).

    Self-loops are only added for nodes that do not already have one
    (matches add_remaining_self_loops)."""
    src, dst = edge_index[0], edge_index[1]
    a = jnp.zeros((num_nodes, num_nodes), jnp.float32)
    a = a.at[dst, src].add(1.0)                              # row = target, col = source
    has_self = jnp.diag(a) > 0
    a = a + jnp.diag(jnp.where(has_self, 0.0, 1.0))          # add remaining self loops
    deg = jnp.sum(a, axis=1)
    dinv = jnp.where(deg > 0, 1.0 / jnp.sqrt(deg), 0.0)
    return dinv[:, None] * a * dinv[None, :]


def glorot(key, shape):
    fan_in, fan_out = shape
    limit = jnp.sqrt(6.0 / (fan_in + fan_out))
    return jax.random.uniform(key, shape, jnp.float32, -limit, limit)


def gcn_reference(a_hat, x, w1, b1, w2, b2):
    """Pure fp32 JAX reference (eval-mode forward of the PyTorch module)."""
    h = a_hat @ (x @ w1) + b1
    h = jnp.maximum(h, 0.0)
    logits = a_hat @ (h @ w2) + b2
    m = jnp.max(logits, axis=1, keepdims=True)
    z = logits - m
    return z - jnp.log(jnp.sum(jnp.exp(z), axis=1, keepdims=True))


# ----------------------------- demo --------------------------------------------


if __name__ == "__main__":
    key = jax.random.PRNGKey(0)
    k_feat, k_edge, k_w1, k_w2 = jax.random.split(key, 4)

    num_nodes = 64
    num_node_features = 8
    hidden = 16            # GCNConv(num_node_features, 16)
    num_classes = 4        # GCNConv(16, num_classes)
    num_edges = 128

    # deterministic node features
    x = jax.random.normal(k_feat, (num_nodes, num_node_features), jnp.float32)

    # deterministic random edge list, symmetrized (undirected graph)
    e = jax.random.randint(k_edge, (2, num_edges), 0, num_nodes, jnp.int32)
    edge_index = jnp.concatenate([e, e[::-1]], axis=1)       # [2, 2E]

    a_hat = build_normalized_adjacency(edge_index, num_nodes)

    # deterministic parameters (glorot weights, zero bias — PyG GCNConv defaults)
    w1 = glorot(k_w1, (num_node_features, hidden))
    b1 = jnp.zeros((1, hidden), jnp.float32)
    w2 = glorot(k_w2, (hidden, num_classes))
    b2 = jnp.zeros((1, num_classes), jnp.float32)

    out = gcn_forward(a_hat, x, w1, b1, w2, b2)
    jax.block_until_ready(out)

    assert out.shape == (num_nodes, num_classes)
    # log_softmax rows should sum to ~1 in prob space
    assert jnp.allclose(jnp.sum(jnp.exp(out), axis=1), 1.0, atol=1e-3)
    # match the fp32 reference within bf16-matmul tolerance
    ref = gcn_reference(a_hat, x, w1, b1, w2, b2)
    assert jnp.max(jnp.abs(out - ref)) < 0.15
    print("KERNEL_OK")
</pallas_src>

<mosaic_0001>
module attributes {stable_mosaic.version = 11 : i64} {
  func.func @gcn_layer1_kernel(%arg0: i32, %arg1: memref<64x64xbf16, #tpu.memory_space<vmem>>, %arg2: memref<64x8xbf16, #tpu.memory_space<vmem>>, %arg3: memref<8x128xbf16, #tpu.memory_space<vmem>>, %arg4: memref<1x128xf32, #tpu.memory_space<vmem>>, %arg5: memref<64x128xbf16, #tpu.memory_space<vmem>>) attributes {dimension_semantics = [#tpu.dimension_semantics<parallel>], iteration_bounds = array<i64: 1>, scalar_prefetch = 0 : i64, scratch_operands = 0 : i64, tpu.core_type = #tpu.core_type<tc>, window_params = [{transform_indices = @transform_0, window_bounds = array<i64: 64, 64>}, {pipeline_mode = #tpu.pipeline_mode<synchronous>, transform_indices = @transform_1, window_bounds = array<i64: 64, 8>}, {pipeline_mode = #tpu.pipeline_mode<synchronous>, transform_indices = @transform_2, window_bounds = array<i64: 8, 128>}, {pipeline_mode = #tpu.pipeline_mode<synchronous>, transform_indices = @transform_3, window_bounds = array<i64: 1, 128>}, {transform_indices = @transform_4, window_bounds = array<i64: 64, 128>}]} {
    %c0 = arith.constant 0 : index
    %c0_0 = arith.constant 0 : index
    %0 = vector.load %arg1[%c0, %c0_0] : memref<64x64xbf16, #tpu.memory_space<vmem>>, vector<64x64xbf16>
    %c0_1 = arith.constant 0 : index
    %c0_2 = arith.constant 0 : index
    %1 = vector.load %arg2[%c0_1, %c0_2] : memref<64x8xbf16, #tpu.memory_space<vmem>>, vector<64x8xbf16>
    %cst = arith.constant dense<0.000000e+00> : vector<64x8xf32>
    %2 = tpu.matmul %0, %1, %cst {dimension_numbers = #tpu.dot_dimension_numbers<[1], [0], [0], [1], [0, 0, 1, 1], [], []>} : vector<64x64xbf16>, vector<64x8xbf16>, vector<64x8xf32> -> vector<64x8xf32>
    %3 = arith.truncf %2 : vector<64x8xf32> to vector<64x8xbf16>
    %c0_3 = arith.constant 0 : index
    %c0_4 = arith.constant 0 : index
    %4 = vector.load %arg3[%c0_3, %c0_4] : memref<8x128xbf16, #tpu.memory_space<vmem>>, vector<8x128xbf16>
    %cst_5 = arith.constant dense<0.000000e+00> : vector<64x128xf32>
    %5 = tpu.matmul %3, %4, %cst_5 {dimension_numbers = #tpu.dot_dimension_numbers<[1], [0], [0], [1], [0, 0, 1, 1], [], []>} : vector<64x8xbf16>, vector<8x128xbf16>, vector<64x128xf32> -> vector<64x128xf32>
    %c0_6 = arith.constant 0 : index
    %c0_7 = arith.constant 0 : index
    %6 = vector.load %arg4[%c0_6, %c0_7] : memref<1x128xf32, #tpu.memory_space<vmem>>, vector<1x128xf32>
    %7 = vector.broadcast %6 : vector<1x128xf32> to vector<64x128xf32>
    %8 = arith.addf %5, %7 : vector<64x128xf32>
    %cst_8 = arith.constant 0.000000e+00 : f32
    %9 = vector.broadcast %cst_8 : f32 to vector<64x128xf32>
    %10 = arith.maximumf %8, %9 : vector<64x128xf32>
    %11 = arith.truncf %10 : vector<64x128xf32> to vector<64x128xbf16>
    %c0_9 = arith.constant 0 : index
    %c0_10 = arith.constant 0 : index
    %12 = vector.load %arg5[%c0_9, %c0_10] : memref<64x128xbf16, #tpu.memory_space<vmem>>, vector<64x128xbf16>
    tpu.vector_store %arg5[%c0_9, %c0_10], %11 {strides = array<i32>} : memref<64x128xbf16, #tpu.memory_space<vmem>>, vector<64x128xbf16>,
    return
  }
  func.func @transform_0(%arg0: i32) -> (i32, i32) {
    %c0_i32 = arith.constant 0 : i32
    %c0_i32_0 = arith.constant 0 : i32
    return %arg0, %c0_i32 : i32, i32
  }
  func.func @transform_1(%arg0: i32) -> (i32, i32) {
    %c0_i32 = arith.constant 0 : i32
    %c0_i32_0 = arith.constant 0 : i32
    %c0_i32_1 = arith.constant 0 : i32
    return %c0_i32, %c0_i32_0 : i32, i32
  }
  func.func @transform_2(%arg0: i32) -> (i32, i32) {
    %c0_i32 = arith.constant 0 : i32
    %c0_i32_0 = arith.constant 0 : i32
    %c0_i32_1 = arith.constant 0 : i32
    return %c0_i32, %c0_i32_0 : i32, i32
  }
  func.func @transform_3(%arg0: i32) -> (i32, i32) {
    %c0_i32 = arith.constant 0 : i32
    %c0_i32_0 = arith.constant 0 : i32
    %c0_i32_1 = arith.constant 0 : i32
    return %c0_i32, %c0_i32_0 : i32, i32
  }
  func.func @transform_4(%arg0: i32) -> (i32, i32) {
    %c0_i32 = arith.constant 0 : i32
    %c0_i32_0 = arith.constant 0 : i32
    return %arg0, %c0_i32 : i32, i32
  }
}

</mosaic_0001>

<llo_original>
// kernel: tpu_custom_call.1
$region0: #{tpu_custom_call.1}
  #allocation0 [shape = 'u32[]', space=smem, size = 0x4, offset = 0x4, fixed_abs, tag = 'smem constant byte address 0x4 - core index']
  #allocation1 [shape = 'u32[144,128]{1,0:T(1,128)}', space=vmem, size = 0x12000, scoped, tag = 'internal scratch']
  %s0 = inlined_call_operand.vmem [shape: bf16[64,64], index: 0, kind: input, shape index: {}]
  %s1 = inlined_call_operand.vmem [shape: bf16[64,8], index: 1, kind: input, shape index: {}]
  %s2 = inlined_call_operand.vmem [shape: bf16[8,128], index: 2, kind: input, shape index: {}]
  %s3 = inlined_call_operand.vmem [shape: f32[1,128], index: 3, kind: input, shape index: {}]
  %s4 = inlined_call_operand.hbm [shape: bf16[64,128], index: 4, kind: output, shape index: {}]
  %s5 = sld [smem:[#allocation0]]
  $region26: #{tpu_custom_call.1} parent=0
    _
  %s7 = ssub.s32 1, %s5
  %s8 = scalar_select 0, %s7, %s5
  $region1: #{tpu_custom_call.1} parent=0
    #allocation2 [shape = 'u8[16384]{0}', space=vmem, size = 0x4000, scoped, tag = 'output window, operand 0, single buffered']
    #allocation3 [shape = 's32[1]{0}', space=sflag, size = 0x4, scoped, tag = 'scoped memory for tpu_custom_call.1']
    %9 = vsyncpa [#allocation3], 0
    // Predicated region
    $region2: #{tpu_custom_call.1} parent=1 // pred_check
      _
    $region3: #{tpu_custom_call.1} parent=1 // pred_check_branch
      %11 = sbr.rel (0) target = $region5
    $region4: #{tpu_custom_call.1} parent=1 // pred_region
      _
    $region5: #{tpu_custom_call.1} parent=1 // pred_fallthru
      _
    // Predicated region
    $region6: #{tpu_custom_call.1} parent=1 // pred_check
      _
    $region7: #{tpu_custom_call.1} parent=1 // pred_check_branch
      %13 = sbr.rel (0) target = $region9
    $region8: #{tpu_custom_call.1} parent=1 // pred_region
      _
    $region9: #{tpu_custom_call.1} parent=1 // pred_fallthru
      _
    // Predicated region
    $region10: #{tpu_custom_call.1} parent=1 // pred_check
      _
    $region11: #{tpu_custom_call.1} parent=1 // pred_check_branch
      %15 = sbr.rel (0) target = $region13
    $region12: #{tpu_custom_call.1} parent=1 // pred_region
      _
    $region13: #{tpu_custom_call.1} parent=1 // pred_fallthru
      _
    // Predicated region
    $region14: #{tpu_custom_call.1} parent=1 // pred_check
      _
    $region15: #{tpu_custom_call.1} parent=1 // pred_check_branch
      %17 = sbr.rel (0) target = $region17
    $region16: #{tpu_custom_call.1} parent=1 // pred_region
      _
    $region17: #{tpu_custom_call.1} parent=1 // pred_fallthru
      _
    %v19 = vld [vmem:[%s0] sm:$0xf]
    %v20 = vld [vmem:[%s0 + $0x4] sm:$0xf]
    %v21 = vld [vmem:[%s0 + $0x8] sm:$0xf]
    %v22 = vld [vmem:[%s0 + $0xc] sm:$0xf]
    %v23 = vld [vmem:[%s0 + $0x10] sm:$0xf]
    %v24 = vld [vmem:[%s0 + $0x14] sm:$0xf]
    %v25 = vld [vmem:[%s0 + $0x18] sm:$0xf]
    %v26 = vld [vmem:[%s0 + $0x1c] sm:$0xf]
    %v27 = vld [vmem:[%s1] sm:$0xf]
    %v28 = vld [vmem:[%s1 + $0x4] sm:$0xf]
    %v29 = vld [vmem:[%s1 + $0x8] sm:$0xf]
    %v30 = vld [vmem:[%s1 + $0xc] sm:$0xf]
    %v31 = vld [vmem:[%s1 + $0x10] sm:$0xf]
    %v32 = vld [vmem:[%s1 + $0x14] sm:$0xf]
    %v33 = vld [vmem:[%s1 + $0x18] sm:$0xf]
    %v34 = vld [vmem:[%s1 + $0x1c] sm:$0xf]
    %v43 = vunpack.c.l.b16 %v19
    %v44 = vunpack.c.l.b16 %v20
    %v45 = vunpack.c.l.b16 %v21
    %v46 = vunpack.c.l.b16 %v22
    %v47 = vunpack.c.l.b16 %v23
    %v48 = vunpack.c.l.b16 %v24
    %v49 = vunpack.c.l.b16 %v25
    %v50 = vunpack.c.l.b16 %v26
    %v51 = vpack.c.b16 %v44, %v43
    %v52 = vpack.c.b16 %v46, %v45
    %v53 = vpack.c.b16 %v48, %v47
    %v54 = vpack.c.b16 %v50, %v49
    %v63 = vunpack.c.l.b16 %v27
    %v64 = vunpack.c.l.b16 %v28
    %v65 = vunpack.c.l.b16 %v29
    %v66 = vunpack.c.l.b16 %v30
    %v67 = vunpack.c.l.b16 %v31
    %v68 = vunpack.c.l.b16 %v32
    %v69 = vunpack.c.l.b16 %v33
    %v70 = vunpack.c.l.b16 %v34
    %v71 = vpack.c.b16 %v64, %v63
    %v72 = vpack.c.b16 %v66, %v65
    %v73 = vpack.c.b16 %v68, %v67
    %v74 = vpack.c.b16 %v70, %v69
    %vm79 = vcmask 523264
    %v81 = vsel %vm79, %v51, 0
    %v84 = vsel %vm79, %v52, 0
    %v87 = vsel %vm79, %v53, 0
    %v90 = vsel %vm79, %v54, 0
    %92 = vmatprep.subr.bf16.mxu0 0
    %93 = vmatpush1.bf16.msra.mxu0 0
    %94 = vmatprep.subr.bf16.mxu0 0
    %95 = vmatpush1.bf16.msra.mxu0 0
    %96 = vmatprep.subr.bf16.mxu0 0
    %97 = vmatpush1.bf16.msra.mxu0 0
    %98 = vmatprep.subr.bf16.mxu0 0
    %99 = vmatpush1.bf16.msra.mxu0 0
    %100 = vmatprep.subr.bf16.mxu0 0
    %101 = vmatpush1.bf16.msra.mxu0 %v74
    %102 = vmatprep.subr.bf16.mxu0 0
    %103 = vmatpush1.bf16.msra.mxu0 %v73
    %104 = vmatprep.subr.bf16.mxu0 0
    %105 = vmatpush1.bf16.msra.mxu0 %v72
    %106 = vmatprep.subr.bf16.mxu0 0
    %107 = vmatpush1.bf16.msra.mxu0 %v71
    %108 = vmatprep.subr.bf16.mxu0 0
    %109 = vmatpush2.bf16.msra.mxu0 0
    %110 = vmatprep.subr.bf16.mxu0 0
    %111 = vmatpush2.bf16.msra.mxu0 0
    %112 = vmatprep.subr.bf16.mxu0 0
    %113 = vmatpush2.bf16.msra.mxu0 0
    %114 = vmatprep.subr.bf16.mxu0 0
    %115 = vmatpush2.bf16.msra.mxu0 0
    %116 = vmatprep.subr.bf16.mxu0 0
    %117 = vmatpush2.bf16.msra.mxu0 0
    %118 = vmatprep.subr.bf16.mxu0 0
    %119 = vmatpush2.bf16.msra.mxu0 0
    %120 = vmatprep.subr.bf16.mxu0 0
    %121 = vmatpush2.bf16.msra.mxu0 0
    %122 = vmatprep.subr.bf16.mxu0 0
    %123 = vmatpush2.bf16.msra.mxu0 0
    %124 = vmatprep.mubr.bf16.mxu0 0
    %125 = vmatmul.mubr.bf16.gmra.mxu0 %v81
    %v126 = vpop.f32.mrf.mxu0
    %v127 = vadd.f32 0.0, %v126
    %v128 = vpop.f32.mrf.mxu0
    %v129 = vpop.f32.mrf.mxu0
    %v130 = vadd.f32 0.0, %v129
    %v131 = vpop.f32.mrf.mxu0
    %132 = vmatprep.mubr.bf16.mxu0 0
    %133 = vmatmul.mubr.bf16.gmra.mxu0 %v84
    %v134 = vpop.f32.mrf.mxu0
    %v135 = vadd.f32 0.0, %v134
    %v136 = vpop.f32.mrf.mxu0
    %v137 = vpop.f32.mrf.mxu0
    %v138 = vadd.f32 0.0, %v137
    %v139 = vpop.f32.mrf.mxu0
    %140 = vmatprep.mubr.bf16.mxu0 0
    %141 = vmatmul.mubr.bf16.gmra.mxu0 %v87
    %v142 = vpop.f32.mrf.mxu0
    %v143 = vadd.f32 0.0, %v142
    %v144 = vpop.f32.mrf.mxu0
    %v145 = vpop.f32.mrf.mxu0
    %v146 = vadd.f32 0.0, %v145
    %v147 = vpop.f32.mrf.mxu0
    %148 = vmatprep.mubr.bf16.mxu0 0
    %149 = vmatmul.mubr.bf16.gmra.mxu0 %v90
    %v150 = vpop.f32.mrf.mxu0
    %v151 = vadd.f32 0.0, %v150
    %v152 = vpop.f32.mrf.mxu0
    %v153 = vpop.f32.mrf.mxu0
    %v154 = vadd.f32 0.0, %v153
    %v155 = vpop.f32.mrf.mxu0
    %156 = vdwg.mxu0
    %v157 = vpack.c.bf16 %v130, %v127
    %v158 = vpack.c.bf16 %v138, %v135
    %v159 = vpack.c.bf16 %v146, %v143
    %v160 = vpack.c.bf16 %v154, %v151
    %v161 = vld [vmem:[%s2] sm:$0xf]
    %v162 = vld [vmem:[%s3] sm:$0x1]
    %v164 = vlaneseq
    %v165 = vshrl.u32 %v164, 7
    %v166 = vsub.s32 0, %v165
    %v167 = vrot.slane %v162, %v166
    %vm169 = vcmask 64512
    %v171 = vsel %vm169, %v157, 0
    %v174 = vsel %vm169, %v158, 0
    %v177 = vsel %vm169, %v159, 0
    %v180 = vsel %vm169, %v160, 0
    %vm182 = vcmask 1043456
    %v184 = vsel %vm182, %v161, 0
    %186 = vmatprep.subr.bf16.mxu0 0
    %187 = vmatpush1.bf16.msra.mxu0 0
    %188 = vmatprep.subr.bf16.mxu0 0
    %189 = vmatpush1.bf16.msra.mxu0 0
    %190 = vmatprep.subr.bf16.mxu0 0
    %191 = vmatpush1.bf16.msra.mxu0 0
    %192 = vmatprep.subr.bf16.mxu0 0
    %193 = vmatpush1.bf16.msra.mxu0 0
    %194 = vmatprep.subr.bf16.mxu0 0
    %195 = vmatpush1.bf16.msra.mxu0 0
    %196 = vmatprep.subr.bf16.mxu0 0
    %197 = vmatpush1.bf16.msra.mxu0 0
    %198 = vmatprep.subr.bf16.mxu0 0
    %199 = vmatpush1.bf16.msra.mxu0 0
    %200 = vmatprep.subr.bf16.mxu0 0
    %201 = vmatpush1.bf16.msra.mxu0 %v184
    %202 = vmatprep.subr.bf16.mxu0 0
    %203 = vmatpush2.bf16.msra.mxu0 0
    %204 = vmatprep.subr.bf16.mxu0 0
    %205 = vmatpush2.bf16.msra.mxu0 0
    %206 = vmatprep.subr.bf16.mxu0 0
    %207 = vmatpush2.bf16.msra.mxu0 0
    %208 = vmatprep.subr.bf16.mxu0 0
    %209 = vmatpush2.bf16.msra.mxu0 0
    %210 = vmatprep.subr.bf16.mxu0 0
    %211 = vmatpush2.bf16.msra.mxu0 0
    %212 = vmatprep.subr.bf16.mxu0 0
    %213 = vmatpush2.bf16.msra.mxu0 0
    %214 = vmatprep.subr.bf16.mxu0 0
    %215 = vmatpush2.bf16.msra.mxu0 0
    %216 = vmatprep.subr.bf16.mxu0 0
    %217 = vmatpush2.bf16.msra.mxu0 0
    %218 = vmatprep.mubr.bf16.mxu0 0
    %219 = vmatmul.mubr.bf16.gmra.mxu0 %v171
    %v220 = vpop.f32.mrf.mxu0
    %v221 = vadd.f32 %v167, %v220
    %v222 = vpop.f32.mrf.mxu0
    %v223 = vpop.f32.mrf.mxu0
    %v224 = vadd.f32 %v167, %v223
    %v225 = vpop.f32.mrf.mxu0
    %226 = vmatprep.mubr.bf16.mxu0 0
    %227 = vmatmul.mubr.bf16.gmra.mxu0 %v174
    %v228 = vpop.f32.mrf.mxu0
    %v229 = vadd.f32 %v167, %v228
    %v230 = vpop.f32.mrf.mxu0
    %v231 = vpop.f32.mrf.mxu0
    %v232 = vadd.f32 %v167, %v231
    %v233 = vpop.f32.mrf.mxu0
    %234 = vmatprep.mubr.bf16.mxu0 0
    %235 = vmatmul.mubr.bf16.gmra.mxu0 %v177
    %v236 = vpop.f32.mrf.mxu0
    %v237 = vadd.f32 %v167, %v236
    %v238 = vpop.f32.mrf.mxu0
    %v239 = vpop.f32.mrf.mxu0
    %v240 = vadd.f32 %v167, %v239
    %v241 = vpop.f32.mrf.mxu0
    %242 = vmatprep.mubr.bf16.mxu0 0
    %243 = vmatmul.mubr.bf16.gmra.mxu0 %v180
    %v244 = vpop.f32.mrf.mxu0
    %v245 = vadd.f32 %v167, %v244
    %v246 = vpop.f32.mrf.mxu0
    %v247 = vpop.f32.mrf.mxu0
    %v248 = vadd.f32 %v167, %v247
    %v249 = vpop.f32.mrf.mxu0
    %250 = vdwg.mxu0
    %v251 = vmax.f32 %v221, 0.0
    %v252 = vmax.f32 %v224, 0.0
    %v253 = vmax.f32 %v229, 0.0
    %v254 = vmax.f32 %v232, 0.0
    %v255 = vmax.f32 %v237, 0.0
    %v256 = vmax.f32 %v240, 0.0
    %v257 = vmax.f32 %v245, 0.0
    %v258 = vmax.f32 %v248, 0.0
    %v259 = vpack.c.bf16 %v252, %v251
    %v260 = vpack.c.bf16 %v254, %v253
    %v261 = vpack.c.bf16 %v256, %v255
    %v262 = vpack.c.bf16 %v258, %v257
    %v267 = vunpack.c.l.b16 %v259
    %v268 = vunpack.c.h.b16 %v259
    %v269 = vunpack.c.l.b16 %v260
    %v270 = vunpack.c.h.b16 %v260
    %v271 = vunpack.c.l.b16 %v261
    %v272 = vunpack.c.h.b16 %v261
    %v273 = vunpack.c.l.b16 %v262
    %v274 = vunpack.c.h.b16 %v262
    %v275 = vpack.c.b16 %v267, %v267
    %v276 = vpack.c.b16 %v268, %v268
    %v277 = vpack.c.b16 %v269, %v269
    %v278 = vpack.c.b16 %v270, %v270
    %v279 = vpack.c.b16 %v271, %v271
    %v280 = vpack.c.b16 %v272, %v272
    %v281 = vpack.c.b16 %v273, %v273
    %v282 = vpack.c.b16 %v274, %v274
    %291 = vst [vmem:[#allocation2] sm:$0xf] %v275
    %292 = vst [vmem:[#allocation2 + $0x4] sm:$0xf] %v276
    %293 = vst [vmem:[#allocation2 + $0x8] sm:$0xf] %v277
    %294 = vst [vmem:[#allocation2 + $0xc] sm:$0xf] %v278
    %295 = vst [vmem:[#allocation2 + $0x10] sm:$0xf] %v279
    %296 = vst [vmem:[#allocation2 + $0x14] sm:$0xf] %v280
    %297 = vst [vmem:[#allocation2 + $0x18] sm:$0xf] %v281
    %298 = vst [vmem:[#allocation2 + $0x1c] sm:$0xf] %v282
    // Predicated region
    $region18: #{tpu_custom_call.1} parent=1 // pred_check
      _
    $region19: #{tpu_custom_call.1} parent=1 // pred_check_branch
      %300 = sbr.rel (0) target = $region21
    $region20: #{tpu_custom_call.1} parent=1 // pred_region
      %s302 = ssub.s32 512, 512
      %303 = vsyncadd [#allocation3], %s302
      %s304 = sshll.u32 [#allocation2], 4
      %s305 = int_to_ptr.vmem [resolvable:$true] %s304
      %310 = dma.vmem_to_hbm [thread:$0]  %s305, 512, %s4, [#allocation3], 64, 64, 4
    $region21: #{tpu_custom_call.1} parent=1 // pred_fallthru
      _
    // Predicated region
    $region22: #{tpu_custom_call.1} parent=1 // pred_check
      _
    $region23: #{tpu_custom_call.1} parent=1 // pred_check_branch
      %312 = sbr.rel (0) target = $region25
    $region24: #{tpu_custom_call.1} parent=1 // pred_region
      %313 = dma.done [#allocation3], 512
    $region25: #{tpu_custom_call.1} parent=1 // pred_fallthru
      _
    %314 = vsyncpa [#allocation3], 1

</llo_original>
